<compile_context>
chip_gen: v7x
topology: tpu7x:2x2x1
jax: 0.10.0
libtpu: 0.0.40
codegen_flags: <defaults>
</compile_context>

<pallas_src>
import functools

import jax
import jax.numpy as jnp
from jax.experimental import pallas as pl
from jax.experimental.pallas import tpu as pltpu


def _round_up(x: int, m: int) -> int:
    return ((x + m - 1) // m) * m


def _round_down(x: int, m: int) -> int:
    return (x // m) * m


def _vmem_capacity_bytes(default: int = 64 << 20) -> int:
    """Per-generation VMEM capacity (v5e/v6e: 128 MiB, v7x: 64 MiB per TC)."""
    try:
        info = pltpu.get_tpu_info()
        return int(getattr(info, "vmem_capacity_bytes", default))
    except Exception:
        return default


def classifier_head_kernel(h_ref, w_ref, b_ref, out_ref, *, num_labels):
    """Linear head + log_softmax over one batch tile.

    Grid: (batch tiles,). The whole weight / bias stay resident in VMEM.
      h_ref:   (TB, D)  last-token hidden tile (native compute dtype, e.g. bf16)
      w_ref:   (D, Lp)  classifier weight (same dtype as h)
      b_ref:   (1, Lp)  classifier bias (f32, zero in padded columns)
      out_ref: (TB, Lp) f32 log-probabilities
    """
    logits = jnp.dot(h_ref[...], w_ref[...], preferred_element_type=jnp.float32)
    logits = logits + b_ref[...].astype(jnp.float32)

    # Mask padded label columns so they never contaminate max / sum.
    if num_labels < logits.shape[-1]:
        col = jax.lax.broadcasted_iota(jnp.int32, logits.shape, 1)
        logits = jnp.where(col < num_labels, logits, -1e30)

    # Numerically-stable log_softmax (per row; safe for garbage rows in a
    # ragged last tile, which are sliced off by the wrapper).
    m = jnp.max(logits, axis=-1, keepdims=True)
    shifted = logits - m
    lse = jnp.log(jnp.sum(jnp.exp(shifted), axis=-1, keepdims=True))
    out_ref[...] = (shifted - lse).astype(out_ref.dtype)


def llama_embedding_classifier_forward(input_ids, emb_table, w_cls, b_cls,
                                       *, block_b=1024):
    """Forward pass matching LlamaEmbeddingClassifier.forward (eval mode).

    input_ids: (B, S) int32
    emb_table: (V, D)  -- synthetic stand-in for the llama backbone's hidden
                          states (dtype = backbone compute dtype, e.g. bf16)
    w_cls:     (D, L)  -- classifier_head weight (transposed vs. torch Linear)
    b_cls:     (L,)    -- classifier_head bias
    returns:   (B, L) float32 log-probabilities
    """
    # --- "llama" backbone stand-in + step 1: last-token hidden state only.
    hidden_last = emb_table[input_ids[:, -1]]                 # (B, D), native dtype
    # --- step 2: dropout -> identity at inference time.

    B, D = hidden_last.shape
    L = w_cls.shape[1]
    Lp = _round_up(L, 128)                                    # lane-dense output

    compute_dtype = hidden_last.dtype
    h_itemsize = jnp.dtype(compute_dtype).itemsize

    # Weight / bias padded along the label axis only (tiny, one-time cost).
    w_p = jnp.zeros((D, Lp), compute_dtype).at[:, :L].set(w_cls.astype(compute_dtype))
    b_p = jnp.zeros((1, Lp), jnp.float32).at[0, :L].set(b_cls.astype(jnp.float32))

    # --- Batch tile sizing against the per-generation VMEM budget -----------
    vmem_cap = _vmem_capacity_bytes()
    budget = int(0.55 * vmem_cap)
    fixed_bytes = 2 * D * Lp * h_itemsize + 2 * Lp * 4        # resident weight + bias
    per_row_bytes = 2 * D * h_itemsize + 2 * Lp * 4           # dbl-buffered h row + f32 out row
    max_tb = max(16, _round_down(max(budget - fixed_bytes, 0) // per_row_bytes, 16))

    TB = max(16, _round_down(min(block_b, max_tb), 16))       # multiple of 16 (bf16 packing)
    if TB >= B:
        TB = B                                                # one full-batch block (always legal)
        if B >= 32:                                           # give v7x's 2 TCs separate tiles
            half = _round_up(pl.cdiv(B, 2), 16)
            if half < B:
                TB = half
    num_b_tiles = pl.cdiv(B, TB)

    working_bytes = fixed_bytes + TB * per_row_bytes
    vmem_limit = int(min(max(working_bytes + (8 << 20), 16 << 20),
                         int(0.9 * vmem_cap)))

    # --- Specs ---------------------------------------------------------------
    h_index = lambda bi: (bi, 0)
    if num_b_tiles >= 4:
        # Hide DMA latency of tiny per-tile compute behind a deeper pipeline.
        h_spec = pl.BlockSpec((TB, D), h_index, pipeline_mode=pl.Buffered(3))
    else:
        h_spec = pl.BlockSpec((TB, D), h_index)

    cost = pl.CostEstimate(
        flops=2 * B * D * Lp,
        transcendentals=B * Lp,
        bytes_accessed=(B * D * h_itemsize + D * Lp * h_itemsize
                        + Lp * 4 + B * Lp * 4),
    )

    out_padded = pl.pallas_call(
        functools.partial(classifier_head_kernel, num_labels=L),
        out_shape=jax.ShapeDtypeStruct((B, Lp), jnp.float32),
        grid_spec=pltpu.PrefetchScalarGridSpec(
            num_scalar_prefetch=0,
            grid=(num_b_tiles,),
            in_specs=[
                h_spec,                                          # hidden tile (streamed)
                pl.BlockSpec((D, Lp), lambda bi: (0, 0)),        # weight (VMEM-resident)
                pl.BlockSpec((1, Lp), lambda bi: (0, 0)),        # bias   (VMEM-resident)
            ],
            out_specs=pl.BlockSpec((TB, Lp), lambda bi: (bi, 0)),
        ),
        compiler_params=pltpu.CompilerParams(
            dimension_semantics=("parallel",),
            vmem_limit_bytes=int(vmem_limit),
        ),
        cost_estimate=cost,
    )(hidden_last, w_p, b_p)

    # Strip label padding (no batch padding was ever added).
    return out_padded[:, :L] if Lp != L else out_padded


if __name__ == "__main__":
    # Small shapes consistent with the module's forward:
    #   batch=2, seq=8, hidden(dim)=32, vocab=64, num_labels=5
    B, S, D, V, L = 2, 8, 32, 64, 5

    key = jax.random.PRNGKey(0)
    k_ids, k_emb, k_w, k_b = jax.random.split(key, 4)

    input_ids = jax.random.randint(k_ids, (B, S), 0, V, dtype=jnp.int32)
    # Backbone hidden states are bf16 in a real Llama; the stand-in table matches.
    emb_table = (jax.random.normal(k_emb, (V, D), dtype=jnp.float32) * 0.02
                 ).astype(jnp.bfloat16)
    # torch.nn.Linear(D, L): weight (L, D), bias (L). Store transposed weight (D, L).
    w_cls = jax.random.normal(k_w, (D, L), dtype=jnp.float32) * (1.0 / jnp.sqrt(D))
    b_cls = jax.random.normal(k_b, (L,), dtype=jnp.float32) * 0.01

    log_probs = llama_embedding_classifier_forward(input_ids, emb_table, w_cls, b_cls)
    log_probs = jax.block_until_ready(log_probs)

    # Reference in plain JAX (same bf16 MXU operands, f32 accumulation).
    hidden = emb_table[input_ids[:, -1]]
    ref_logits = jnp.dot(hidden, w_cls.astype(hidden.dtype),
                         preferred_element_type=jnp.float32) + b_cls
    ref = jax.nn.log_softmax(ref_logits, axis=-1)

    assert log_probs.shape == (B, L)
    assert log_probs.dtype == jnp.float32
    assert jnp.allclose(log_probs, ref, atol=1e-4, rtol=1e-4), "mismatch vs reference"
    # log-probs should exponentiate-sum to 1 per row
    assert jnp.allclose(jnp.exp(log_probs).sum(-1), 1.0, atol=1e-4)

    print("KERNEL_OK")
</pallas_src>

<mosaic_0001>
module attributes {stable_mosaic.version = 11 : i64} {
  func.func @classifier_head_kernel(%arg0: i32, %arg1: memref<2x32xbf16, #tpu.memory_space<vmem>>, %arg2: memref<32x128xbf16, #tpu.memory_space<vmem>>, %arg3: memref<1x128xf32, #tpu.memory_space<vmem>>, %arg4: memref<2x128xf32, #tpu.memory_space<vmem>>) attributes {dimension_semantics = [#tpu.dimension_semantics<parallel>], iteration_bounds = array<i64: 1>, scalar_prefetch = 0 : i64, scratch_operands = 0 : i64, tpu.core_type = #tpu.core_type<tc>, window_params = [{transform_indices = @transform_0, window_bounds = array<i64: 2, 32>}, {pipeline_mode = #tpu.pipeline_mode<synchronous>, transform_indices = @transform_1, window_bounds = array<i64: 32, 128>}, {pipeline_mode = #tpu.pipeline_mode<synchronous>, transform_indices = @transform_2, window_bounds = array<i64: 1, 128>}, {transform_indices = @transform_3, window_bounds = array<i64: 2, 128>}]} {
    %c0 = arith.constant 0 : index
    %c0_0 = arith.constant 0 : index
    %0 = vector.load %arg1[%c0, %c0_0] : memref<2x32xbf16, #tpu.memory_space<vmem>>, vector<2x32xbf16>
    %c0_1 = arith.constant 0 : index
    %c0_2 = arith.constant 0 : index
    %1 = vector.load %arg2[%c0_1, %c0_2] : memref<32x128xbf16, #tpu.memory_space<vmem>>, vector<32x128xbf16>
    %cst = arith.constant dense<0.000000e+00> : vector<2x128xf32>
    %2 = tpu.matmul %0, %1, %cst {dimension_numbers = #tpu.dot_dimension_numbers<[1], [0], [0], [1], [0, 0, 1, 1], [], []>} : vector<2x32xbf16>, vector<32x128xbf16>, vector<2x128xf32> -> vector<2x128xf32>
    %c0_3 = arith.constant 0 : index
    %c0_4 = arith.constant 0 : index
    %3 = vector.load %arg3[%c0_3, %c0_4] : memref<1x128xf32, #tpu.memory_space<vmem>>, vector<1x128xf32>
    %4 = vector.broadcast %3 : vector<1x128xf32> to vector<2x128xf32>
    %5 = arith.addf %2, %4 : vector<2x128xf32>
    %6 = tpu.iota {dimensions = array<i32: 1>} : vector<2x128xi32>
    %c5_i32 = arith.constant 5 : i32
    %7 = vector.broadcast %c5_i32 : i32 to vector<2x128xi32>
    %8 = arith.cmpi slt, %6, %7 : vector<2x128xi32>
    %cst_5 = arith.constant -1.000000e+30 : f32
    %9 = vector.broadcast %cst_5 : f32 to vector<2x128xf32>
    %10 = arith.select %8, %5, %9 : vector<2x128xi1>, vector<2x128xf32>
    %cst_6 = arith.constant dense<0xFF800000> : vector<2xf32>
    %11 = vector.multi_reduction <maximumf>, %10, %cst_6 [1] : vector<2x128xf32> to vector<2xf32>
    %12 = vector.shape_cast %11 : vector<2xf32> to vector<2x1xf32>
    %13 = vector.broadcast %12 : vector<2x1xf32> to vector<2x128xf32>
    %14 = arith.subf %10, %13 : vector<2x128xf32>
    %15 = math.exp %14 : vector<2x128xf32>
    %cst_7 = arith.constant dense<0.000000e+00> : vector<2xf32>
    %16 = vector.multi_reduction <add>, %15, %cst_7 [1] : vector<2x128xf32> to vector<2xf32>
    %17 = vector.shape_cast %16 : vector<2xf32> to vector<2x1xf32>
    %18 = math.log %17 : vector<2x1xf32>
    %19 = vector.broadcast %18 : vector<2x1xf32> to vector<2x128xf32>
    %20 = arith.subf %14, %19 : vector<2x128xf32>
    %c0_8 = arith.constant 0 : index
    %c0_9 = arith.constant 0 : index
    %21 = vector.load %arg4[%c0_8, %c0_9] : memref<2x128xf32, #tpu.memory_space<vmem>>, vector<2x128xf32>
    tpu.vector_store %arg4[%c0_8, %c0_9], %20 {strides = array<i32>} : memref<2x128xf32, #tpu.memory_space<vmem>>, vector<2x128xf32>,
    return
  }
  func.func @transform_0(%arg0: i32) -> (i32, i32) {
    %c0_i32 = arith.constant 0 : i32
    %c0_i32_0 = arith.constant 0 : i32
    return %arg0, %c0_i32 : i32, i32
  }
  func.func @transform_1(%arg0: i32) -> (i32, i32) {
    %c0_i32 = arith.constant 0 : i32
    %c0_i32_0 = arith.constant 0 : i32
    %c0_i32_1 = arith.constant 0 : i32
    return %c0_i32, %c0_i32_0 : i32, i32
  }
  func.func @transform_2(%arg0: i32) -> (i32, i32) {
    %c0_i32 = arith.constant 0 : i32
    %c0_i32_0 = arith.constant 0 : i32
    %c0_i32_1 = arith.constant 0 : i32
    return %c0_i32, %c0_i32_0 : i32, i32
  }
  func.func @transform_3(%arg0: i32) -> (i32, i32) {
    %c0_i32 = arith.constant 0 : i32
    %c0_i32_0 = arith.constant 0 : i32
    return %arg0, %c0_i32 : i32, i32
  }
}

</mosaic_0001>

<llo_original>
// kernel: tpu_custom_call.1
$region0: #{tpu_custom_call.1}
  #allocation0 [shape = 'u32[]', space=smem, size = 0x4, offset = 0x4, fixed_abs, tag = 'smem constant byte address 0x4 - core index']
  #allocation1 [shape = 'u32[144,128]{1,0:T(1,128)}', space=vmem, size = 0x12000, scoped, tag = 'internal scratch']
  %s0 = inlined_call_operand.hbm [shape: bf16[2,32], index: 0, kind: input, shape index: {}]
  %s1 = inlined_call_operand.hbm [shape: bf16[32,128], index: 1, kind: input, shape index: {}]
  %s2 = inlined_call_operand.vmem [shape: f32[1,128], index: 2, kind: input, shape index: {}]
  %s3 = inlined_call_operand.hbm [shape: f32[2,128], index: 3, kind: output, shape index: {}]
  %s4 = sld [smem:[#allocation0]]
  $region30: #{tpu_custom_call.1} parent=0
    _
  %s6 = ssub.s32 1, %s4
  %s7 = scalar_select 0, %s6, %s4
  $region1: #{tpu_custom_call.1} parent=0
    #allocation2 [shape = 'u8[512]{0}', space=vmem, size = 0x400, scoped, tag = 'input window, operand 0, single buffered']
    #allocation3 [shape = 's32[1]{0}', space=sflag, size = 0x4, scoped, tag = 'scoped memory for tpu_custom_call.1']
    #allocation4 [shape = 's32[1]{0}', space=sflag, size = 0x4, scoped, tag = 'scoped memory for tpu_custom_call.1']
    #allocation5 [shape = 'u8[8192]{0}', space=vmem, size = 0x2000, scoped, tag = 'input window, operand 1, single buffered']
    #allocation6 [shape = 's32[1]{0}', space=sflag, size = 0x4, scoped, tag = 'scoped memory for tpu_custom_call.1']
    #allocation7 [shape = 'u8[1024]{0}', space=vmem, size = 0x400, scoped, tag = 'output window, operand 0, single buffered']
    %8 = vsyncpa [#allocation3], 0
    %9 = vsyncpa [#allocation6], 0
    %10 = vsyncpa [#allocation4], 0
    // Predicated region
    $region2: #{tpu_custom_call.1} parent=1 // pred_check
      _
    $region3: #{tpu_custom_call.1} parent=1 // pred_check_branch
      %12 = sbr.rel (0) target = $region5
    $region4: #{tpu_custom_call.1} parent=1 // pred_region
      %s14 = ssub.s32 16, 16
      %15 = vsyncadd [#allocation3], %s14
      %s17 = sshll.u32 [#allocation2], 4
      %s18 = int_to_ptr.vmem [resolvable:$true] %s17
      %20 = dma.hbm_to_vmem [thread:$0]  %s0, 16, %s18, [#allocation3]
    $region5: #{tpu_custom_call.1} parent=1 // pred_fallthru
      _
    // Predicated region
    $region6: #{tpu_custom_call.1} parent=1 // pred_check
      _
    $region7: #{tpu_custom_call.1} parent=1 // pred_check_branch
      %22 = sbr.rel (0) target = $region9
    $region8: #{tpu_custom_call.1} parent=1 // pred_region
      %s24 = ssub.s32 256, 256
      %25 = vsyncadd [#allocation6], %s24
      %s26 = sshll.u32 [#allocation5], 4
      %s27 = int_to_ptr.vmem [resolvable:$true] %s26
      %32 = dma.hbm_to_vmem [thread:$0]  %s1, 256, %s27, [#allocation6], 64, 64, 4
    $region9: #{tpu_custom_call.1} parent=1 // pred_fallthru
      _
    // Predicated region
    $region10: #{tpu_custom_call.1} parent=1 // pred_check
      _
    $region11: #{tpu_custom_call.1} parent=1 // pred_check_branch
      %34 = sbr.rel (0) target = $region13
    $region12: #{tpu_custom_call.1} parent=1 // pred_region
      _
    $region13: #{tpu_custom_call.1} parent=1 // pred_fallthru
      _
    // Predicated region
    $region14: #{tpu_custom_call.1} parent=1 // pred_check
      _
    $region15: #{tpu_custom_call.1} parent=1 // pred_check_branch
      %36 = sbr.rel (0) target = $region17
    $region16: #{tpu_custom_call.1} parent=1 // pred_region
      %37 = dma.done [#allocation3], 16
    $region17: #{tpu_custom_call.1} parent=1 // pred_fallthru
      _
    // Predicated region
    $region18: #{tpu_custom_call.1} parent=1 // pred_check
      _
    $region19: #{tpu_custom_call.1} parent=1 // pred_check_branch
      %39 = sbr.rel (0) target = $region21
    $region20: #{tpu_custom_call.1} parent=1 // pred_region
      %40 = dma.done [#allocation6], 256
    $region21: #{tpu_custom_call.1} parent=1 // pred_fallthru
      _
    %v42 = vld [vmem:[#allocation2] sm:$0x1]
    %v43 = vld [vmem:[#allocation5] sm:$0xf]
    %v44 = vld [vmem:[#allocation5 + $0x4] sm:$0xf]
    %v45 = vld [vmem:[#allocation5 + $0x8] sm:$0xf]
    %v46 = vld [vmem:[#allocation5 + $0xc] sm:$0xf]
    %v47 = vld [vmem:[%s2] sm:$0x1]
    %v49 = vlaneseq
    %v50 = vshrl.u32 %v49, 7
    %v51 = vsub.s32 0, %v50
    %v52 = vrot.slane %v47, %v51
    %v58 = vunpack.c.l.b16 %v43
    %v59 = vunpack.c.l.b16 %v44
    %v60 = vunpack.c.l.b16 %v45
    %v61 = vunpack.c.l.b16 %v46
    %v62 = vpack.c.b16 %v59, %v58
    %v63 = vpack.c.b16 %v61, %v60
    %vm66 = vcmask 261120
    %v68 = vsel %vm66, %v42, 0
    %70 = vmatprep.subr.bf16.mxu0 0
    %71 = vmatpush1.bf16.msra.mxu0 %v62
    %72 = vmatprep.subr.bf16.mxu0 0
    %73 = vmatpush1.bf16.msra.mxu0 %v63
    %74 = vmatprep.subr.bf16.mxu0 0
    %75 = vmatpush1.bf16.msra.mxu0 0
    %76 = vmatprep.subr.bf16.mxu0 0
    %77 = vmatpush1.bf16.msra.mxu0 0
    %78 = vmatprep.subr.bf16.mxu0 0
    %79 = vmatpush1.bf16.msra.mxu0 0
    %80 = vmatprep.subr.bf16.mxu0 0
    %81 = vmatpush1.bf16.msra.mxu0 0
    %82 = vmatprep.subr.bf16.mxu0 0
    %83 = vmatpush1.bf16.msra.mxu0 0
    %84 = vmatprep.subr.bf16.mxu0 0
    %85 = vmatpush1.bf16.msra.mxu0 0
    %86 = vmatprep.subr.bf16.mxu0 0
    %87 = vmatpush1.bf16.msra.mxu0 0
    %88 = vmatprep.subr.bf16.mxu0 0
    %89 = vmatpush1.bf16.msra.mxu0 0
    %90 = vmatprep.subr.bf16.mxu0 0
    %91 = vmatpush1.bf16.msra.mxu0 0
    %92 = vmatprep.subr.bf16.mxu0 0
    %93 = vmatpush1.bf16.msra.mxu0 0
    %94 = vmatprep.subr.bf16.mxu0 0
    %95 = vmatpush1.bf16.msra.mxu0 0
    %96 = vmatprep.subr.bf16.mxu0 0
    %97 = vmatpush1.bf16.msra.mxu0 0
    %98 = vmatprep.subr.bf16.mxu0 0
    %99 = vmatpush1.bf16.msra.mxu0 0
    %100 = vmatprep.subr.bf16.mxu0 0
    %101 = vmatpush1.bf16.msra.mxu0 0
    %102 = vmatprep.mubr.bf16.mxu0 0
    %103 = vmatmul.mubr.bf16.gmra.mrb[0].mxu0 %v68
    %v104 = vpop.f32.mrb[0].mxu0
    %v105 = vadd.f32 %v52, %v104
    %v106 = vpop.f32.mrb[0].mxu0
    %v107 = vpop.f32.mrb[0].mxu0
    %v108 = vpop.f32.mrb[0].mxu0
    %109 = vdwg.mxu0
    %v110 = vlaneseq
    %v111 = vand.u32 %v110, 127
    %vm112 = vcmp.lt.s32.totalorder %v111, 5
    %v113 = vsel %vm112, %v105, -1e+30
    %vm114 = vcmask 1041408
    %v115 = vsel %vm114, %v113, -inf
    %116 = vmax.xlane.f32.xlu0 %v115
    %v117 = vpop.xlane.xlu0 %116
    %v118 = vsub.f32 %v113, %v117
    %v119 = vmul.f32 %v118, 1.442695
    %v120 = vpow.pop %v119
    %v121 = vsel %vm114, %v120, 0.0
    %122 = vadd.xlane.f32.xlu0 %v121
    %v123 = vpop.xlane.xlu0 %122
    %v124 = vlog2.pop %v123
    %v125 = vmul.f32 %v124, 0.6931472
    %v126 = vsub.f32 %v118, %v125
    %127 = vst [vmem:[#allocation7] sm:$0x3] %v126
    // Predicated region
    $region22: #{tpu_custom_call.1} parent=1 // pred_check
      _
    $region23: #{tpu_custom_call.1} parent=1 // pred_check_branch
      %129 = sbr.rel (0) target = $region25
    $region24: #{tpu_custom_call.1} parent=1 // pred_region
      %s131 = ssub.s32 32, 32
      %132 = vsyncadd [#allocation4], %s131
      %s134 = sshll.u32 [#allocation7], 4
      %s135 = int_to_ptr.vmem [resolvable:$true] %s134
      %137 = dma.vmem_to_hbm [thread:$0]  %s135, 32, %s3, [#allocation4]
    $region25: #{tpu_custom_call.1} parent=1 // pred_fallthru
      _
    // Predicated region
    $region26: #{tpu_custom_call.1} parent=1 // pred_check
      _
    $region27: #{tpu_custom_call.1} parent=1 // pred_check_branch
      %139 = sbr.rel (0) target = $region29
    $region28: #{tpu_custom_call.1} parent=1 // pred_region
      %140 = dma.done [#allocation4], 32
    $region29: #{tpu_custom_call.1} parent=1 // pred_fallthru
      _
    %141 = vsyncpa [#allocation3], 1
    %142 = vsyncpa [#allocation6], 1
    %143 = vsyncpa [#allocation4], 1

</llo_original>
